<compile_context>
chip_gen: v5e
topology: v5e:2x2
jax: 0.10.0
libtpu: 0.0.40
codegen_flags: <defaults>
</compile_context>

<pallas_src>
import functools

import jax
import jax.numpy as jnp
from jax.experimental import pallas as pl
from jax.experimental.pallas import tpu as pltpu


# ----------------------------------------------------------------------------
# Kernel: one (batch-tile, point-tile) step of the SNet forward.
# ----------------------------------------------------------------------------

def _snet_kernel(x_ref, w1_ref, b1_ref, w3_ref, b3_ref, w4_ref, b4_ref,
                 v_ref, pooled_scr, *, k):
    """Shapes (per step):
      x_ref:      (TB, k, NT)  bf16 input points (PyTorch NCW layout)
      w1_ref:     (16, k)      conv1 weight, bn1 folded
      b1_ref:     (1, 16)      conv1 bias,  bn1 folded
      w3_ref:     (16, kk)     fc3 weight,  bn6 folded
      b3_ref:     (kk, 1)      fc3 bias,    bn6 folded
      w4_ref:     (kk, 1)      fc4 weight
      b4_ref:     (1, 1)       fc4 bias
      v_ref:      (1, 1, TB)   fc4 output, batch on lanes (lane-dense store)
      pooled_scr: (TB, 16)     running max over points (pre-bias, pre-ReLU)
    """
    ni = pl.program_id(1)

    @pl.when(ni == 0)
    def _init():
        pooled_scr[...] = jnp.full_like(pooled_scr, -jnp.inf)

    x = x_ref[...].astype(jnp.float32)                 # (TB, k, NT), f32 compute
    w1 = w1_ref[...]                                   # (16, k)

    # conv1 (1x1) as a k-term VPU FMA, vectorized over batch & points.
    # Bias + ReLU are deferred past the max-pool (both commute with max).
    acc = w1[:, 0:1] * x[:, 0:1, :]                    # (TB, 16, NT)
    for j in range(1, k):
        acc = acc + w1[:, j:j + 1] * x[:, j:j + 1, :]
    # TODO(synk): replace the (TB,1,NT)->(TB,16,NT) sublane broadcast with a
    # stride-0 load (x_ref[:, pl.ds(j, 16, stride=0), :]) to keep the XLU free.

    tile_max = jnp.max(acc, axis=2)                    # (TB, 16) lane-axis reduce
    pooled_scr[...] = jnp.maximum(pooled_scr[...], tile_max)

    @pl.when(ni == pl.num_programs(1) - 1)
    def _finalize():
        # bn1 bias + ReLU after the global max; batch goes to lanes from here on.
        pooled = jnp.maximum(pooled_scr[...] + b1_ref[...], 0.0)     # (TB, 16)
        pooled_t = pooled.T                                          # (16, TB)
        # fc3 + bn6 + ReLU (16 -> kk): broadcast-multiply + leading-axis sum
        # (these shapes are far too small for the MXU; pure VPU).
        z3 = jnp.sum(w3_ref[...][:, :, None] * pooled_t[:, None, :], axis=0)
        z3 = jnp.maximum(z3 + b3_ref[...], 0.0)                      # (kk, TB)
        # fc4 (kk -> 1): sublane reduce.
        v = jnp.sum(w4_ref[...] * z3, axis=0, keepdims=True) + b4_ref[...]  # (1, TB)
        v_ref[0] = v


# ----------------------------------------------------------------------------
# Parameter construction (deterministic, synthetic) + BN folding
# ----------------------------------------------------------------------------

def _init_linear(key, fan_in, fan_out):
    kw, kb = jax.random.split(key)
    bound = 1.0 / jnp.sqrt(jnp.float32(fan_in))
    w = jax.random.uniform(kw, (fan_in, fan_out), jnp.float32, -bound, bound)
    b = jax.random.uniform(kb, (fan_out,), jnp.float32, -bound, bound)
    return w, b   # (in, out)


def _init_bn(key, c):
    k1, k2, k3, k4 = jax.random.split(key, 4)
    gamma = 1.0 + 0.1 * jax.random.normal(k1, (c,), jnp.float32)
    beta = 0.1 * jax.random.normal(k2, (c,), jnp.float32)
    mean = 0.1 * jax.random.normal(k3, (c,), jnp.float32)
    var = 1.0 + 0.1 * jax.random.uniform(k4, (c,), jnp.float32)
    return gamma, beta, mean, var


def _fold_bn(w, b, bn, eps=1e-5):
    gamma, beta, mean, var = bn
    s = gamma * jax.lax.rsqrt(var + eps)
    return w * s[None, :], (b - mean) * s + beta


def build_params(key, k=3):
    kk = k * k
    keys = jax.random.split(key, 5)
    p = {}

    # conv1 (k -> 16) + bn1 folded; stored (16, k) for channels-on-sublanes FMA.
    w, b = _init_linear(keys[0], k, 16)
    w, b = _fold_bn(w, b, _init_bn(keys[1], 16))
    p["w1"] = jnp.transpose(w)            # (16, k)
    p["b1"] = b.reshape(1, 16)

    # fc3 (16 -> k*k) + bn6 folded.
    w, b = _init_linear(keys[2], 16, kk)
    w, b = _fold_bn(w, b, _init_bn(keys[3], kk))
    p["w3"] = w                            # (16, kk)
    p["b3"] = b.reshape(kk, 1)

    # fc4 (k*k -> 1).
    w, b = _init_linear(keys[4], kk, 1)
    p["w4"] = w                            # (kk, 1)
    p["b4"] = b.reshape(1, 1)
    return p


# ----------------------------------------------------------------------------
# Tiling heuristics + wrapper
# ----------------------------------------------------------------------------

_TB_CAP = 128     # batch elements per grid step (lane width of the v output)
_NT_CAP = 2048    # points per grid step (keeps the (TB,16,NT) f32 temp well inside VMEM)


def _pick_batch_tile(batch, cap=_TB_CAP):
    """Largest divisor of `batch` <= cap that still leaves >=2 grid steps
    (both v7x TensorCores get work); falls back to 1."""
    if batch == 1:
        return 1
    best = 1
    for t in range(1, min(cap, batch // 2) + 1):
        if batch % t == 0:
            best = t
    return best


def _pick_point_tile(n, cap=_NT_CAP):
    """Full N if it fits, else the largest 128-aligned divisor of N <= cap."""
    if n <= cap:
        return n
    for t in range((cap // 128) * 128, 127, -128):
        if n % t == 0:
            return t
    return n   # no lane-aligned divisor: fall back to a single full-N block


@functools.partial(jax.jit, static_argnames=("k",))
def snet_forward(x, params, k=3):
    """x: (B, k, N) float in PyTorch NCW layout. Returns (transform(B,k,k), y(B,1))."""
    B, C, N = x.shape
    assert C == k
    kk = k * k
    p = params

    # Stream the only large input as bf16 (no-op if the caller already holds bf16).
    if x.dtype != jnp.bfloat16:
        x = x.astype(jnp.bfloat16)

    tb = _pick_batch_tile(B)
    nt = _pick_point_tile(N)
    nb, nn = B // tb, N // nt

    const = lambda bi, ni: (0, 0)
    v_tiles = pl.pallas_call(
        functools.partial(_snet_kernel, k=k),
        grid=(nb, nn),                                   # reduction (point) axis last
        in_specs=[
            pl.BlockSpec((tb, C, nt), lambda bi, ni: (bi, 0, ni)),   # input points
            pl.BlockSpec((16, C), const),                            # w1 (bn1 folded)
            pl.BlockSpec((1, 16), const),                            # b1
            pl.BlockSpec((16, kk), const),                           # w3 (bn6 folded)
            pl.BlockSpec((kk, 1), const),                            # b3
            pl.BlockSpec((kk, 1), const),                            # w4
            pl.BlockSpec((1, 1), const),                             # b4
        ],
        out_specs=pl.BlockSpec((1, 1, tb), lambda bi, ni: (bi, 0, 0)),
        out_shape=jax.ShapeDtypeStruct((nb, 1, tb), jnp.float32),
        scratch_shapes=[pltpu.VMEM((tb, 16), jnp.float32)],          # running max
        compiler_params=pltpu.CompilerParams(
            dimension_semantics=("parallel", "arbitrary")),
    )(x, p["w1"], p["b1"], p["w3"], p["b3"], p["w4"], p["b4"])

    v = v_tiles.reshape(B, 1)                                        # y

    # Transform assembly (F.pad + eye with [0,0]=0) stays in XLA: a grid-invariant
    # constant plus a trivially-fused add on a tiny tensor.
    iden = jnp.eye(k, dtype=jnp.float32).at[0, 0].set(0.0).reshape(1, kk)
    first = (jnp.arange(kk) == 0).astype(jnp.float32)[None, :]
    transform = (v * first + iden).reshape(B, k, k)
    return transform, v


# ----------------------------------------------------------------------------
# Pure-JAX reference (for correctness check)
# ----------------------------------------------------------------------------

def snet_reference(x, p, k=3):
    x = x.astype(jnp.float32)
    B = x.shape[0]
    kk = k * k
    h = jnp.einsum("ok,bkn->bon", p["w1"], x) + p["b1"].reshape(1, 16, 1)   # (B,16,N)
    h = jnp.maximum(h, 0.0)
    pooled = jnp.max(h, axis=2)                                             # (B,16)
    z3 = jnp.maximum(pooled @ p["w3"] + p["b3"].reshape(1, kk), 0.0)        # (B,kk)
    v = z3 @ p["w4"] + p["b4"].reshape(1, 1)                                # (B,1)
    iden = jnp.eye(k, dtype=jnp.float32).at[0, 0].set(0.0).reshape(1, kk)
    padded = jnp.concatenate([v, jnp.zeros((B, kk - 1), jnp.float32)], axis=1)
    return (padded + iden).reshape(B, k, k), v


# ----------------------------------------------------------------------------
# Main
# ----------------------------------------------------------------------------

if __name__ == "__main__":
    B, K, N_PTS = 2, 3, 256
    key = jax.random.PRNGKey(0)
    kx, kp = jax.random.split(key)

    x_f32 = jax.random.normal(kx, (B, K, N_PTS), jnp.float32)   # PyTorch NCW input
    x = x_f32.astype(jnp.bfloat16)                              # stream bf16 from HBM
    params = build_params(kp, k=K)

    transform, y = snet_forward(x, params, k=K)
    transform = jax.block_until_ready(transform)
    y = jax.block_until_ready(y)

    t_ref, y_ref = snet_reference(x, params, k=K)

    assert transform.shape == (B, K, K)
    assert y.shape == (B, 1)
    assert jnp.all(jnp.isfinite(transform)) and jnp.all(jnp.isfinite(y))
    assert bool(jnp.allclose(transform, t_ref, atol=1e-4, rtol=1e-4))
    assert bool(jnp.allclose(y, y_ref, atol=1e-4, rtol=1e-4))
    # structural sanity: off-scalar entries are exactly eye(k) with [0,0]=0
    assert bool(jnp.allclose(transform[:, 1:, :],
                             jnp.broadcast_to(jnp.eye(K)[1:], (B, K - 1, K))))
    print("KERNEL_OK")
</pallas_src>

<mosaic_0001>
module attributes {stable_mosaic.version = 11 : i64} {
  func.func @_snet_kernel(%arg0: i32, %arg1: i32, %arg2: memref<1x3x256xbf16, #tpu.memory_space<vmem>>, %arg3: memref<16x3xf32, #tpu.memory_space<vmem>>, %arg4: memref<1x16xf32, #tpu.memory_space<vmem>>, %arg5: memref<16x9xf32, #tpu.memory_space<vmem>>, %arg6: memref<9x1xf32, #tpu.memory_space<vmem>>, %arg7: memref<9x1xf32, #tpu.memory_space<vmem>>, %arg8: memref<1x1xf32, #tpu.memory_space<vmem>>, %arg9: memref<1x1x1xf32, #tpu.memory_space<vmem>>, %arg10: memref<1x16xf32, #tpu.memory_space<vmem>>) attributes {dimension_semantics = [#tpu.dimension_semantics<parallel>, #tpu.dimension_semantics<arbitrary>], iteration_bounds = array<i64: 2, 1>, scalar_prefetch = 0 : i64, scratch_operands = 1 : i64, tpu.core_type = #tpu.core_type<tc>, window_params = [{transform_indices = @transform_0, window_bounds = array<i64: 1, 3, 256>}, {pipeline_mode = #tpu.pipeline_mode<synchronous>, transform_indices = @transform_1, window_bounds = array<i64: 16, 3>}, {pipeline_mode = #tpu.pipeline_mode<synchronous>, transform_indices = @transform_2, window_bounds = array<i64: 1, 16>}, {pipeline_mode = #tpu.pipeline_mode<synchronous>, transform_indices = @transform_3, window_bounds = array<i64: 16, 9>}, {pipeline_mode = #tpu.pipeline_mode<synchronous>, transform_indices = @transform_4, window_bounds = array<i64: 9, 1>}, {pipeline_mode = #tpu.pipeline_mode<synchronous>, transform_indices = @transform_5, window_bounds = array<i64: 9, 1>}, {pipeline_mode = #tpu.pipeline_mode<synchronous>, transform_indices = @transform_6, window_bounds = array<i64: 1, 1>}, {transform_indices = @transform_7, window_bounds = array<i64: 1, 1, 1>}]} {
    %c0_i32 = arith.constant 0 : i32
    %0 = arith.cmpi eq, %arg1, %c0_i32 : i32
    %1 = arith.extui %0 : i1 to i32
    %c0_i32_0 = arith.constant 0 : i32
    %2 = arith.cmpi ne, %1, %c0_i32_0 : i32
    scf.if %2 {
      %cst_11 = arith.constant 0xFF800000 : f32
      %33 = vector.broadcast %cst_11 : f32 to vector<1x16xf32>
      %c0_12 = arith.constant 0 : index
      %c0_13 = arith.constant 0 : index
      %34 = vector.load %arg10[%c0_12, %c0_13] : memref<1x16xf32, #tpu.memory_space<vmem>>, vector<1x16xf32>
      tpu.vector_store %arg10[%c0_12, %c0_13], %33 {strides = array<i32>} : memref<1x16xf32, #tpu.memory_space<vmem>>, vector<1x16xf32>,
    } else {
    }
    %c0 = arith.constant 0 : index
    %c0_1 = arith.constant 0 : index
    %c0_2 = arith.constant 0 : index
    %3 = vector.load %arg2[%c0, %c0_1, %c0_2] : memref<1x3x256xbf16, #tpu.memory_space<vmem>>, vector<1x3x256xbf16>
    %4 = arith.extf %3 : vector<1x3x256xbf16> to vector<1x3x256xf32>
    %c0_3 = arith.constant 0 : index
    %c0_4 = arith.constant 0 : index
    %5 = vector.load %arg3[%c0_3, %c0_4] : memref<16x3xf32, #tpu.memory_space<vmem>>, vector<16x3xf32>
    %6 = vector.extract_strided_slice %5 {offsets = [0, 0], sizes = [16, 1], strides = [1, 1]} : vector<16x3xf32> to vector<16x1xf32>
    %7 = vector.extract_strided_slice %4 {offsets = [0, 0, 0], sizes = [1, 1, 256], strides = [1, 1, 1]} : vector<1x3x256xf32> to vector<1x1x256xf32>
    %8 = vector.shape_cast %6 : vector<16x1xf32> to vector<1x16x1xf32>
    %9 = vector.broadcast %8 : vector<1x16x1xf32> to vector<1x16x256xf32>
    %10 = vector.broadcast %7 : vector<1x1x256xf32> to vector<1x16x256xf32>
    %11 = arith.mulf %9, %10 : vector<1x16x256xf32>
    %12 = vector.extract_strided_slice %5 {offsets = [0, 1], sizes = [16, 1], strides = [1, 1]} : vector<16x3xf32> to vector<16x1xf32>
    %13 = vector.extract_strided_slice %4 {offsets = [0, 1, 0], sizes = [1, 1, 256], strides = [1, 1, 1]} : vector<1x3x256xf32> to vector<1x1x256xf32>
    %14 = vector.shape_cast %12 : vector<16x1xf32> to vector<1x16x1xf32>
    %15 = vector.broadcast %14 : vector<1x16x1xf32> to vector<1x16x256xf32>
    %16 = vector.broadcast %13 : vector<1x1x256xf32> to vector<1x16x256xf32>
    %17 = arith.mulf %15, %16 : vector<1x16x256xf32>
    %18 = arith.addf %11, %17 : vector<1x16x256xf32>
    %19 = vector.extract_strided_slice %5 {offsets = [0, 2], sizes = [16, 1], strides = [1, 1]} : vector<16x3xf32> to vector<16x1xf32>
    %20 = vector.extract_strided_slice %4 {offsets = [0, 2, 0], sizes = [1, 1, 256], strides = [1, 1, 1]} : vector<1x3x256xf32> to vector<1x1x256xf32>
    %21 = vector.shape_cast %19 : vector<16x1xf32> to vector<1x16x1xf32>
    %22 = vector.broadcast %21 : vector<1x16x1xf32> to vector<1x16x256xf32>
    %23 = vector.broadcast %20 : vector<1x1x256xf32> to vector<1x16x256xf32>
    %24 = arith.mulf %22, %23 : vector<1x16x256xf32>
    %25 = arith.addf %18, %24 : vector<1x16x256xf32>
    %cst = arith.constant dense<0xFF800000> : vector<1x16xf32>
    %26 = vector.multi_reduction <maximumf>, %25, %cst [2] : vector<1x16x256xf32> to vector<1x16xf32>
    %c0_5 = arith.constant 0 : index
    %c0_6 = arith.constant 0 : index
    %27 = vector.load %arg10[%c0_5, %c0_6] : memref<1x16xf32, #tpu.memory_space<vmem>>, vector<1x16xf32>
    %28 = arith.maximumf %27, %26 : vector<1x16xf32>
    %c0_7 = arith.constant 0 : index
    %c0_8 = arith.constant 0 : index
    %29 = vector.load %arg10[%c0_7, %c0_8] : memref<1x16xf32, #tpu.memory_space<vmem>>, vector<1x16xf32>
    tpu.vector_store %arg10[%c0_7, %c0_8], %28 {strides = array<i32>} : memref<1x16xf32, #tpu.memory_space<vmem>>, vector<1x16xf32>,
    %c0_i32_9 = arith.constant 0 : i32
    %30 = arith.cmpi eq, %arg1, %c0_i32_9 : i32
    %31 = arith.extui %30 : i1 to i32
    %c0_i32_10 = arith.constant 0 : i32
    %32 = arith.cmpi ne, %31, %c0_i32_10 : i32
    scf.if %32 {
      %c0_11 = arith.constant 0 : index
      %c0_12 = arith.constant 0 : index
      %33 = vector.load %arg10[%c0_11, %c0_12] : memref<1x16xf32, #tpu.memory_space<vmem>>, vector<1x16xf32>
      %c0_13 = arith.constant 0 : index
      %c0_14 = arith.constant 0 : index
      %34 = vector.load %arg4[%c0_13, %c0_14] : memref<1x16xf32, #tpu.memory_space<vmem>>, vector<1x16xf32>
      %35 = arith.addf %33, %34 : vector<1x16xf32>
      %cst_15 = arith.constant 0.000000e+00 : f32
      %36 = vector.broadcast %cst_15 : f32 to vector<1x16xf32>
      %37 = arith.maximumf %35, %36 : vector<1x16xf32>
      %38 = tpu.transpose %37, [1, 0] : vector<1x16xf32> -> vector<16x1xf32>
      %c0_16 = arith.constant 0 : index
      %c0_17 = arith.constant 0 : index
      %39 = vector.load %arg5[%c0_16, %c0_17] : memref<16x9xf32, #tpu.memory_space<vmem>>, vector<16x9xf32>
      %40 = vector.shape_cast %39 : vector<16x9xf32> to vector<16x9x1xf32>
      %41 = vector.shape_cast %38 : vector<16x1xf32> to vector<16x1x1xf32>
      %42 = vector.broadcast %41 : vector<16x1x1xf32> to vector<16x9x1xf32>
      %43 = arith.mulf %40, %42 : vector<16x9x1xf32>
      %cst_18 = arith.constant dense<0.000000e+00> : vector<9x1xf32>
      %44 = vector.multi_reduction <add>, %43, %cst_18 [0] : vector<16x9x1xf32> to vector<9x1xf32>
      %c0_19 = arith.constant 0 : index
      %c0_20 = arith.constant 0 : index
      %45 = vector.load %arg6[%c0_19, %c0_20] : memref<9x1xf32, #tpu.memory_space<vmem>>, vector<9x1xf32>
      %46 = arith.addf %44, %45 : vector<9x1xf32>
      %cst_21 = arith.constant 0.000000e+00 : f32
      %47 = vector.broadcast %cst_21 : f32 to vector<9x1xf32>
      %48 = arith.maximumf %46, %47 : vector<9x1xf32>
      %c0_22 = arith.constant 0 : index
      %c0_23 = arith.constant 0 : index
      %49 = vector.load %arg7[%c0_22, %c0_23] : memref<9x1xf32, #tpu.memory_space<vmem>>, vector<9x1xf32>
      %50 = arith.mulf %49, %48 : vector<9x1xf32>
      %cst_24 = arith.constant dense<0.000000e+00> : vector<1xf32>
      %51 = vector.multi_reduction <add>, %50, %cst_24 [0] : vector<9x1xf32> to vector<1xf32>
      %52 = vector.shape_cast %51 : vector<1xf32> to vector<1x1xf32>
      %c0_25 = arith.constant 0 : index
      %c0_26 = arith.constant 0 : index
      %53 = vector.load %arg8[%c0_25, %c0_26] : memref<1x1xf32, #tpu.memory_space<vmem>>, vector<1x1xf32>
      %54 = arith.addf %52, %53 : vector<1x1xf32>
      %c0_27 = arith.constant 0 : index
      %c0_28 = arith.constant 0 : index
      %c0_29 = arith.constant 0 : index
      %55 = vector.load %arg9[%c0_27, %c0_28, %c0_29] : memref<1x1x1xf32, #tpu.memory_space<vmem>>, vector<1x1x1xf32>
      %56 = vector.shape_cast %55 : vector<1x1x1xf32> to vector<1x1xf32>
      %57 = vector.shape_cast %54 : vector<1x1xf32> to vector<1x1x1xf32>
      tpu.vector_store %arg9[%c0_27, %c0_28, %c0_29], %57 {strides = array<i32>} : memref<1x1x1xf32, #tpu.memory_space<vmem>>, vector<1x1x1xf32>,
    } else {
    }
    return
  }
  func.func @transform_0(%arg0: i32, %arg1: i32) -> (i32, i32, i32) {
    %c0_i32 = arith.constant 0 : i32
    %c0_i32_0 = arith.constant 0 : i32
    return %arg0, %c0_i32, %arg1 : i32, i32, i32
  }
  func.func @transform_1(%arg0: i32, %arg1: i32) -> (i32, i32) {
    %c0_i32 = arith.constant 0 : i32
    %c0_i32_0 = arith.constant 0 : i32
    %c0_i32_1 = arith.constant 0 : i32
    return %c0_i32, %c0_i32_0 : i32, i32
  }
  func.func @transform_2(%arg0: i32, %arg1: i32) -> (i32, i32) {
    %c0_i32 = arith.constant 0 : i32
    %c0_i32_0 = arith.constant 0 : i32
    %c0_i32_1 = arith.constant 0 : i32
    return %c0_i32, %c0_i32_0 : i32, i32
  }
  func.func @transform_3(%arg0: i32, %arg1: i32) -> (i32, i32) {
    %c0_i32 = arith.constant 0 : i32
    %c0_i32_0 = arith.constant 0 : i32
    %c0_i32_1 = arith.constant 0 : i32
    return %c0_i32, %c0_i32_0 : i32, i32
  }
  func.func @transform_4(%arg0: i32, %arg1: i32) -> (i32, i32) {
    %c0_i32 = arith.constant 0 : i32
    %c0_i32_0 = arith.constant 0 : i32
    %c0_i32_1 = arith.constant 0 : i32
    return %c0_i32, %c0_i32_0 : i32, i32
  }
  func.func @transform_5(%arg0: i32, %arg1: i32) -> (i32, i32) {
    %c0_i32 = arith.constant 0 : i32
    %c0_i32_0 = arith.constant 0 : i32
    %c0_i32_1 = arith.constant 0 : i32
    return %c0_i32, %c0_i32_0 : i32, i32
  }
  func.func @transform_6(%arg0: i32, %arg1: i32) -> (i32, i32) {
    %c0_i32 = arith.constant 0 : i32
    %c0_i32_0 = arith.constant 0 : i32
    %c0_i32_1 = arith.constant 0 : i32
    return %c0_i32, %c0_i32_0 : i32, i32
  }
  func.func @transform_7(%arg0: i32, %arg1: i32) -> (i32, i32, i32) {
    %c0_i32 = arith.constant 0 : i32
    %c0_i32_0 = arith.constant 0 : i32
    %c0_i32_1 = arith.constant 0 : i32
    return %arg0, %c0_i32, %c0_i32_0 : i32, i32, i32
  }
}

</mosaic_0001>

<llo_original>
// kernel: snet_forward.1
$region0: #{snet_forward.1}
  #allocation0 [shape = 'u32[]', space=smem, size = 0x4, offset = 0x4, fixed_abs, tag = 'smem constant byte address 0x4 - core index']
  #allocation1 [shape = 'u32[72,128]{1,0:T(1,128)}', space=vmem, size = 0x9000, scoped, tag = 'internal scratch']
  #allocation2 [shape = 'f32[1,16]{1,0:T(1,128)}', space=vmem, size = 0x200, scoped, tag = 'scratch operand']
  #allocation3 [shape = 'f32[1,1]{1,0:T(1,128)S(1)}', space=vmem, size = 0x200, scoped, tag = 'scoped memory for snet_forward.1']
  %s0 = inlined_call_operand.vmem [shape: bf16[2,3,256], index: 0, kind: input, shape index: {}]
  %s1 = inlined_call_operand.vmem [shape: f32[16,3], index: 1, kind: input, shape index: {}]
  %s2 = inlined_call_operand.vmem [shape: f32[1,16], index: 2, kind: input, shape index: {}]
  %s3 = inlined_call_operand.vmem [shape: f32[16,9], index: 3, kind: input, shape index: {}]
  %s4 = inlined_call_operand.vmem [shape: f32[9,1], index: 4, kind: input, shape index: {}]
  %s5 = inlined_call_operand.vmem [shape: f32[9,1], index: 5, kind: input, shape index: {}]
  %s6 = inlined_call_operand.<no memory space> [shape: f32[1,1], index: 6, kind: input, shape index: {}]
  %s7 = inlined_call_operand.vmem [shape: f32[2,1,1], index: 7, kind: output, shape index: {}]
  %s8 = sld [smem:[#allocation0]]
  $region69: #{snet_forward.1} parent=0
    _
  %s10 = ssub.s32 1, %s8
  %s11 = scalar_select 0, %s10, %s8
  %v12 = vstv %s6
  %13 = vst [vmem:[#allocation3] sm:$0x1] %v12
  loop: start=0, step=1, limit=4
  $region2: #{snet_forward.1} parent=0 // loop_pre_header
    _
  $region3: #{snet_forward.1} parent=0 // loop_header
    %s15 = sphi 0, %s19
    %p16 = scmp.ge.s32.totalorder %s15, 4
    %s22 = sphi 0, %s34
    %s23 = sphi 0, %s30
    %s24 = sphi 0, %s22
    %s25 = sphi 0, %s23
    %s26 = sphi 0, %s24
    %s27 = sphi 0, %s25
    %s39 = sphi 0, %s41
    %s42 = sphi 0, %s39
    %s43 = sphi 0, %s42
    %s59 = sphi 0, %s43
    %s63 = sphi 0, %s63
    %s65 = sphi 0, %s63
    %s66 = sphi 0, %s65
    %s80 = sphi 0, %s66
    %s84 = sphi 0, %s84
    %s86 = sphi 0, %s84
    %s87 = sphi 0, %s86
    %s101 = sphi 0, %s87
    %s105 = sphi 0, %s105
    %s107 = sphi 0, %s105
    %s108 = sphi 0, %s107
    %s122 = sphi 0, %s108
    %s126 = sphi 0, %s126
    %s128 = sphi 0, %s126
    %s129 = sphi 0, %s128
    %s143 = sphi 0, %s129
    %s147 = sphi 0, %s147
    %s149 = sphi 0, %s147
    %s150 = sphi 0, %s149
    %s164 = sphi 0, %s150
    %s168 = sphi 0, %s168
    %s170 = sphi 0, %s168
    %s171 = sphi 0, %s170
    %s185 = sphi 0, %s171
    %s191 = sphi 0, %s193
    %s194 = sphi 0, %s191
    %s195 = sphi 0, %s194
    %s211 = sphi 0, %s195
  $region4: #{snet_forward.1} parent=0 // loop_header_branch
    %18 = sbr.rel (%p16) target = $region8
  $region5: #{snet_forward.1} parent=0 // loop_body
    %s20 = ssub.s32 %s15, 1
    %s21 = ssub.s32 %s15, 2
    %s28 = sadd.s32 1, %s23
    %p29 = scmp.ge.s32.totalorder %s28, 1
    %s30 = scalar_select %p29, 0, %s28
    %s31 = sadd.s32 1, %s22
    %s32 = scalar_select %p29, %s31, %s22
    %p33 = scmp.ge.s32.totalorder %s32, 2
    %s34 = scalar_select %p33, 0, %s32
    %s35 = ssub.s32 %s22, %s34
    %s36 = ssub.s32 %s23, %s30
    %s37 = sor.u32 %s35, %s36
    %p38 = scmp.eq.s32.totalorder %s37, 0
    %s40 = sadd.s32 %s39, 1
    %s41 = scalar_select %p38, %s39, %s40
    %p44 = pneg %p38
    %p45 = scmp.eq.s32.totalorder %s15, 1
    %p46 = por %p44, %p45
    %p47 = scmp.ne.s32.totalorder %s39, %s42
    %p48 = scmp.eq.s32.totalorder %s15, 0
    %p49 = por %p47, %p48
    %p50 = scmp.ne.s32.totalorder %s39, %s42
    %p51 = scmp.eq.s32.totalorder %s20, 1
    %p52 = por %p50, %p51
    %p53 = scmp.ne.s32.totalorder %s42, %s43
    %p54 = scmp.eq.s32.totalorder %s20, 0
    %p55 = por %p53, %p54
    %p56 = scmp.ne.s32.totalorder %s42, %s43
    %p57 = scmp.eq.s32.totalorder %s21, 1
    %p58 = por %p56, %p57
    %p60 = scmp.ne.s32.totalorder %s43, %s59
    %p61 = scmp.eq.s32.totalorder %s21, 0
    %p62 = por %p60, %p61
    %s64 = sadd.s32 %s63, 1
    %p67 = scmp.eq.s32.totalorder %s15, 1
    %p68 = scmp.ne.s32.totalorder %s63, %s65
    %p69 = scmp.eq.s32.totalorder %s15, 0
    %p70 = por %p68, %p69
    %p71 = scmp.ne.s32.totalorder %s63, %s65
    %p72 = scmp.eq.s32.totalorder %s20, 1
    %p73 = por %p71, %p72
    %p74 = scmp.ne.s32.totalorder %s65, %s66
    %p75 = scmp.eq.s32.totalorder %s20, 0
    %p76 = por %p74, %p75
    %p77 = scmp.ne.s32.totalorder %s65, %s66
    %p78 = scmp.eq.s32.totalorder %s21, 1
    %p79 = por %p77, %p78
    %p81 = scmp.ne.s32.totalorder %s66, %s80
    %p82 = scmp.eq.s32.totalorder %s21, 0
    %p83 = por %p81, %p82
    %s85 = sadd.s32 %s84, 1
    %p88 = scmp.eq.s32.totalorder %s15, 1
    %p89 = scmp.ne.s32.totalorder %s84, %s86
    %p90 = scmp.eq.s32.totalorder %s15, 0
    %p91 = por %p89, %p90
    %p92 = scmp.ne.s32.totalorder %s84, %s86
    %p93 = scmp.eq.s32.totalorder %s20, 1
    %p94 = por %p92, %p93
    %p95 = scmp.ne.s32.totalorder %s86, %s87
    %p96 = scmp.eq.s32.totalorder %s20, 0
    %p97 = por %p95, %p96
    %p98 = scmp.ne.s32.totalorder %s86, %s87
    %p99 = scmp.eq.s32.totalorder %s21, 1
    %p100 = por %p98, %p99
    %p102 = scmp.ne.s32.totalorder %s87, %s101
    %p103 = scmp.eq.s32.totalorder %s21, 0
    %p104 = por %p102, %p103
    %s106 = sadd.s32 %s105, 1
    %p109 = scmp.eq.s32.totalorder %s15, 1
    %p110 = scmp.ne.s32.totalorder %s105, %s107
    %p111 = scmp.eq.s32.totalorder %s15, 0
    %p112 = por %p110, %p111
    %p113 = scmp.ne.s32.totalorder %s105, %s107
    %p114 = scmp.eq.s32.totalorder %s20, 1
    %p115 = por %p113, %p114
    %p116 = scmp.ne.s32.totalorder %s107, %s108
    %p117 = scmp.eq.s32.totalorder %s20, 0
    %p118 = por %p116, %p117
    %p119 = scmp.ne.s32.totalorder %s107, %s108
    %p120 = scmp.eq.s32.totalorder %s21, 1
    %p121 = por %p119, %p120
    %p123 = scmp.ne.s32.totalorder %s108, %s122
    %p124 = scmp.eq.s32.totalorder %s21, 0
    %p125 = por %p123, %p124
    %s127 = sadd.s32 %s126, 1
    %p130 = scmp.eq.s32.totalorder %s15, 1
    %p131 = scmp.ne.s32.totalorder %s126, %s128
    %p132 = scmp.eq.s32.totalorder %s15, 0
    %p133 = por %p131, %p132
    %p134 = scmp.ne.s32.totalorder %s126, %s128
    %p135 = scmp.eq.s32.totalorder %s20, 1
    %p136 = por %p134, %p135
    %p137 = scmp.ne.s32.totalorder %s128, %s129
    %p138 = scmp.eq.s32.totalorder %s20, 0
    %p139 = por %p137, %p138
    %p140 = scmp.ne.s32.totalorder %s128, %s129
    %p141 = scmp.eq.s32.totalorder %s21, 1
    %p142 = por %p140, %p141
    %p144 = scmp.ne.s32.totalorder %s129, %s143
    %p145 = scmp.eq.s32.totalorder %s21, 0
    %p146 = por %p144, %p145
    %s148 = sadd.s32 %s147, 1
    %p151 = scmp.eq.s32.totalorder %s15, 1
    %p152 = scmp.ne.s32.totalorder %s147, %s149
    %p153 = scmp.eq.s32.totalorder %s15, 0
    %p154 = por %p152, %p153
    %p155 = scmp.ne.s32.totalorder %s147, %s149
    %p156 = scmp.eq.s32.totalorder %s20, 1
    %p157 = por %p155, %p156
    %p158 = scmp.ne.s32.totalorder %s149, %s150
    %p159 = scmp.eq.s32.totalorder %s20, 0
    %p160 = por %p158, %p159
    %p161 = scmp.ne.s32.totalorder %s149, %s150
    %p162 = scmp.eq.s32.totalorder %s21, 1
    %p163 = por %p161, %p162
    %p165 = scmp.ne.s32.totalorder %s150, %s164
    %p166 = scmp.eq.s32.totalorder %s21, 0
    %p167 = por %p165, %p166
    %s169 = sadd.s32 %s168, 1
    %p172 = scmp.eq.s32.totalorder %s15, 1
    %p173 = scmp.ne.s32.totalorder %s168, %s170
    %p174 = scmp.eq.s32.totalorder %s15, 0
    %p175 = por %p173, %p174
    %p176 = scmp.ne.s32.totalorder %s168, %s170
    %p177 = scmp.eq.s32.totalorder %s20, 1
    %p178 = por %p176, %p177
    %p179 = scmp.ne.s32.totalorder %s170, %s171
    %p180 = scmp.eq.s32.totalorder %s20, 0
    %p181 = por %p179, %p180
    %p182 = scmp.ne.s32.totalorder %s170, %s171
    %p183 = scmp.eq.s32.totalorder %s21, 1
    %p184 = por %p182, %p183
    %p186 = scmp.ne.s32.totalorder %s171, %s185
    %p187 = scmp.eq.s32.totalorder %s21, 0
    %p188 = por %p186, %p187
    %s189 = ssub.s32 %s22, %s34
    %p190 = scmp.eq.s32.totalorder %s189, 0
    %s192 = sadd.s32 %s191, 1
    %s193 = scalar_select %p190, %s191, %s192
    %p196 = pneg %p190
    %p197 = scmp.eq.s32.totalorder %s15, 1
    %p198 = por %p196, %p197
    %p199 = scmp.ne.s32.totalorder %s191, %s194
    %p200 = scmp.eq.s32.totalorder %s15, 0
    %p201 = por %p199, %p200
    %p202 = scmp.ne.s32.totalorder %s191, %s194
    %p203 = scmp.eq.s32.totalorder %s20, 1
    %p204 = por %p202, %p203
    %p205 = scmp.ne.s32.totalorder %s194, %s195
    %p206 = scmp.eq.s32.totalorder %s20, 0
    %p207 = por %p205, %p206
    %p208 = scmp.ne.s32.totalorder %s194, %s195
    %p209 = scmp.eq.s32.totalorder %s21, 1
    %p210 = por %p208, %p209
    %p212 = scmp.ne.s32.totalorder %s195, %s211
    %p213 = scmp.eq.s32.totalorder %s21, 0
    %p214 = por %p212, %p213
    %p215 = scmp.le.s32.totalorder 1, %s15
    %p216 = scmp.lt.s32.totalorder %s15, 3
    %p217 = pnand %p215, %p216
    %p218 = pneg %p217
    // Predicated region
    $region9: #{snet_forward.1} parent=5 // pred_check
      _
    $region10: #{snet_forward.1} parent=5 // pred_check_branch
      %220 = sbr.rel (%p217) target = $region12
    $region11: #{snet_forward.1} parent=5 // pred_region
      %s221 = ssub.s32 %s15, 1
      // Predicated region
      $region13: #{snet_forward.1} parent=11 // pred_check
        %p222 = pneg %p76
      $region14: #{snet_forward.1} parent=11 // pred_check_branch
        %224 = sbr.rel (%p222) target = $region16
      $region15: #{snet_forward.1} parent=11 // pred_region
        _
      $region16: #{snet_forward.1} parent=11 // pred_fallthru
        _
      // Predicated region
      $region17: #{snet_forward.1} parent=11 // pred_check
        %p225 = pneg %p97
      $region18: #{snet_forward.1} parent=11 // pred_check_branch
        %227 = sbr.rel (%p225) target = $region20
      $region19: #{snet_forward.1} parent=11 // pred_region
        _
      $region20: #{snet_forward.1} parent=11 // pred_fallthru
        _
      // Predicated region
      $region21: #{snet_forward.1} parent=11 // pred_check
        %p228 = pneg %p118
      $region22: #{snet_forward.1} parent=11 // pred_check_branch
        %230 = sbr.rel (%p228) target = $region24
      $region23: #{snet_forward.1} parent=11 // pred_region
        _
      $region24: #{snet_forward.1} parent=11 // pred_fallthru
        _
      // Predicated region
      $region25: #{snet_forward.1} parent=11 // pred_check
        %p231 = pneg %p139
      $region26: #{snet_forward.1} parent=11 // pred_check_branch
        %233 = sbr.rel (%p231) target = $region28
      $region27: #{snet_forward.1} parent=11 // pred_region
        _
      $region28: #{snet_forward.1} parent=11 // pred_fallthru
        _
      // Predicated region
      $region29: #{snet_forward.1} parent=11 // pred_check
        %p234 = pneg %p160
      $region30: #{snet_forward.1} parent=11 // pred_check_branch
        %236 = sbr.rel (%p234) target = $region32
      $region31: #{snet_forward.1} parent=11 // pred_region
        _
      $region32: #{snet_forward.1} parent=11 // pred_fallthru
        _
      // Predicated region
      $region33: #{snet_forward.1} parent=11 // pred_check
        %p237 = pneg %p181
      $region34: #{snet_forward.1} parent=11 // pred_check_branch
        %239 = sbr.rel (%p237) target = $region36
      $region35: #{snet_forward.1} parent=11 // pred_region
        _
      $region36: #{snet_forward.1} parent=11 // pred_fallthru
        _
    $region12: #{snet_forward.1} parent=5 // pred_fallthru
      _
    %p240 = scmp.lt.s32.totalorder %s15, 2
    // Predicated region
    $region37: #{snet_forward.1} parent=5 // pred_check
      %p241 = pneg %p240
    $region38: #{snet_forward.1} parent=5 // pred_check_branch
      %243 = sbr.rel (%p241) target = $region40
    $region39: #{snet_forward.1} parent=5 // pred_region
      // Predicated region
      $region41: #{snet_forward.1} parent=39 // pred_check
        %p244 = pneg %p49
      $region42: #{snet_forward.1} parent=39 // pred_check_branch
        %246 = sbr.rel (%p244) target = $region44
      $region43: #{snet_forward.1} parent=39 // pred_region
        %s247 = smul.u32 2, %s23
        %p248 = scmp.lt.s32.totalorder %s22, 1
        %s249 = scalar_select %p248, %s22, 1
        %p250 = scmp.lt.s32.totalorder %s247, 1
        %s251 = scalar_select %p250, %s247, 1
        %s252 = smul.addr %s249, 2
        %s253 = sadd.s32 %s251, %s252
        %s254 = smul.addr %s253, 2
        %s255 = scalar_lea.vmem %s0, %s254
        %s256 = smul.u32 2, %s23
      $region44: #{snet_forward.1} parent=39 // pred_fallthru
        _
    $region40: #{snet_forward.1} parent=5 // pred_fallthru
      _
    %p257 = scmp.le.s32.totalorder 1, %s15
    %p258 = scmp.lt.s32.totalorder %s15, 3
    %p259 = pnand %p257, %p258
    %p260 = pneg %p259
    // Predicated region
    $region45: #{snet_forward.1} parent=5 // pred_check
      _
    $region46: #{snet_forward.1} parent=5 // pred_check_branch
      %262 = sbr.rel (%p259) target = $region48
    $region47: #{snet_forward.1} parent=5 // pred_region
      %s263 = ssub.s32 %s15, 1
      %s264 = smul.u32 2, %s25
      %p265 = scmp.lt.s32.totalorder %s24, 1
      %s266 = scalar_select %p265, %s24, 1
      %p267 = scmp.lt.s32.totalorder %s264, 1
      %s268 = scalar_select %p267, %s264, 1
      %s269 = smul.addr %s266, 2
      %s270 = sadd.s32 %s268, %s269
      %s271 = smul.addr %s270, 2
      %s272 = scalar_lea.vmem %s0, %s271
      %p273 = pneg %p55
      %p274 = pneg %p52
      %p275 = pneg %p76
      %p276 = pneg %p73
      %p277 = pneg %p97
      %p278 = pneg %p94
      %p279 = pneg %p118
      %p280 = pneg %p115
      %p281 = pneg %p139
      %p282 = pneg %p136
      %p283 = pneg %p160
      %p284 = pneg %p157
      %p285 = pneg %p181
      %p286 = pneg %p178
      %p287 = pneg %p207
      %p288 = pneg %p204
      %p289 = scmp.lt.s32.totalorder %s24, 1
      %s290 = scalar_select %p289, %s24, 1
      %s291 = scalar_lea.vmem %s7, %s290
      %s292 = smul.u32 2, %s25
      %p293 = scmp.lt.s32.totalorder %s24, 1
      %s294 = scalar_select %p293, %s24, 1
      %p295 = scmp.lt.s32.totalorder %s292, 1
      %s296 = scalar_select %p295, %s292, 1
      %s297 = smul.addr %s294, 2
      %s298 = sadd.s32 %s296, %s297
      %s299 = smul.addr %s298, 2
      %s300 = scalar_lea.vmem %s0, %s299
      %s301 = smul.u32 2, %s25
      %p302 = scmp.lt.s32.totalorder %s24, 1
      %s303 = scalar_select %p302, %s24, 1
      %s304 = scalar_lea.vmem %s7, %s303
      %p305 = scmp.eq.s32.totalorder %s25, 0
      // Predicated region
      $region49: #{snet_forward.1} parent=47 // pred_check
        %p306 = pneg %p305
      $region50: #{snet_forward.1} parent=47 // pred_check_branch
        %308 = sbr.rel (%p306) target = $region52
      $region51: #{snet_forward.1} parent=47 // pred_region
        %vm309 = vcmask 122880
        %310 = vst.msk [vmem:[#allocation2] sm:$0x1] %vm309, -inf
      $region52: #{snet_forward.1} parent=47 // pred_fallthru
        _
      %v311 = vld [vmem:[%s300] sm:$0xf]
      %v312 = vunpack.c.l.bf16 %v311
      %v313 = vld [vmem:[%s1] sm:$0xff]
      %v314 = vld [vmem:[%s1 + $0x8] sm:$0xff]
      %316 = vset.pattern.permute.xlu0 0
      %317 = vperm.xlu0 %316, %v313
      %v318 = vpop.permute.xlu0 %317
      %321 = vset.pattern.permute.xlu0 0
      %322 = vperm.xlu0 %321, %v314
      %v323 = vpop.permute.xlu0 %322
      %v326 = vperm.slane %v312, 0
      %v327 = vperm.slane %v312, 4
      %v330 = vperm.slane %v326, 0
      %v331 = vperm.slane %v327, 0
      %v332 = vmul.f32 %v318, %v330
      %v333 = vmul.f32 %v318, %v331
      %v334 = vmul.f32 %v323, %v330
      %v335 = vmul.f32 %v323, %v331
      %336 = vset.pattern.permute.xlu0 1
      %337 = vperm.xlu0 %336, %v313
      %v338 = vpop.permute.xlu0 %337
      %340 = vset.pattern.permute.xlu0 1
      %341 = vperm.xlu0 %340, %v314
      %v342 = vpop.permute.xlu0 %341
      %v344 = vperm.slane %v312, 1
      %v345 = vperm.slane %v312, 5
      %v348 = vperm.slane %v344, 1
      %v349 = vperm.slane %v345, 1
      %v350 = vmul.f32 %v338, %v348
      %v351 = vmul.f32 %v338, %v349
      %v352 = vmul.f32 %v342, %v348
      %v353 = vmul.f32 %v342, %v349
      %v354 = vadd.f32 %v332, %v350
      %v355 = vadd.f32 %v333, %v351
      %v356 = vadd.f32 %v334, %v352
      %v357 = vadd.f32 %v335, %v353
      %358 = vset.pattern.permute.xlu0 2
      %359 = vperm.xlu0 %358, %v313
      %v360 = vpop.permute.xlu0 %359
      %362 = vset.pattern.permute.xlu0 2
      %363 = vperm.xlu0 %362, %v314
      %v364 = vpop.permute.xlu0 %363
      %v366 = vperm.slane %v312, 2
      %v367 = vperm.slane %v312, 6
      %v370 = vperm.slane %v366, 2
      %v371 = vperm.slane %v367, 2
      %v372 = vmul.f32 %v360, %v370
      %v373 = vmul.f32 %v360, %v371
      %v374 = vmul.f32 %v364, %v370
      %v375 = vmul.f32 %v364, %v371
      %v376 = vadd.f32 %v354, %v372
      %v377 = vadd.f32 %v355, %v373
      %v378 = vadd.f32 %v356, %v374
      %v379 = vadd.f32 %v357, %v375
      %v380 = vmax.f32 %v376, %v377
      %381 = vmax.xlane.f32.xlu0 %v380
      %v382 = vpop.xlane.xlu0 %381
      %v383 = vmax.f32 %v378, %v379
      %384 = vmax.xlane.f32.xlu0 %v383
      %v385 = vpop.xlane.xlu0 %384
      %v386 = vld [vmem:[#allocation2] sm:$0x1]
      %v389 = vperm.slane %v382, 0
      %v390 = vperm.slane %v382, 1
      %v391 = vperm.slane %v382, 2
      %v392 = vperm.slane %v382, 3
      %v393 = vperm.slane %v382, 4
      %v394 = vperm.slane %v382, 5
      %v395 = vperm.slane %v382, 6
      %v396 = vperm.slane %v382, 7
      %v397 = vperm.slane %v385, 0
      %v398 = vperm.slane %v385, 1
      %v399 = vperm.slane %v385, 2
      %v400 = vperm.slane %v385, 3
      %v401 = vperm.slane %v385, 4
      %v402 = vperm.slane %v385, 5
      %v403 = vperm.slane %v385, 6
      %v404 = vperm.slane %v385, 7
      %405 = vst [vmem:[#allocation1] ss:$9 sm:$0xff] %v389
      %s406 = scalar_lea.vmem [#allocation1], 1
      %407 = vst [vmem:[%s406] ss:$9 sm:$0xff] %v390
      %s408 = scalar_lea.vmem [#allocation1], 2
      %409 = vst [vmem:[%s408] ss:$9 sm:$0xff] %v391
      %s410 = scalar_lea.vmem [#allocation1], 3
      %411 = vst [vmem:[%s410] ss:$9 sm:$0xff] %v392
      %s412 = scalar_lea.vmem [#allocation1], 4
      %413 = vst [vmem:[%s412] ss:$9 sm:$0xff] %v393
      %s414 = scalar_lea.vmem [#allocation1], 5
      %415 = vst [vmem:[%s414] ss:$9 sm:$0xff] %v394
      %s416 = scalar_lea.vmem [#allocation1], 6
      %417 = vst [vmem:[%s416] ss:$9 sm:$0xff] %v395
      %s418 = scalar_lea.vmem [#allocation1], 7
      %419 = vst [vmem:[%s418] ss:$9 sm:$0xff] %v396
      %v420 = vld [vmem:[#allocation1] sm:$0xff]
      %421 = vst [vmem:[#allocation1] ss:$9 sm:$0xff] %v397
      %422 = vst [vmem:[%s406] ss:$9 sm:$0xff] %v398
      %423 = vst [vmem:[%s408] ss:$9 sm:$0xff] %v399
      %424 = vst [vmem:[%s410] ss:$9 sm:$0xff] %v400
      %425 = vst [vmem:[%s412] ss:$9 sm:$0xff] %v401
      %426 = vst [vmem:[%s414] ss:$9 sm:$0xff] %v402
      %427 = vst [vmem:[%s416] ss:$9 sm:$0xff] %v403
      %428 = vst [vmem:[%s418] ss:$9 sm:$0xff] %v404
      %v429 = vld [vmem:[#allocation1] sm:$0xff]
      %430 = vset.pattern.permute.xlu0 0
      %431 = vperm.xlu0 %430, %v420
      %v432 = vpop.permute.xlu0 %431
      %433 = vset.pattern.permute.xlu0 0
      %434 = vperm.xlu0 %433, %v429
      %v435 = vpop.permute.xlu0 %434
      %v436 = vlaneseq
      %v437 = vand.u32 %v436, 127
      %v438 = vperm.slane %v432, %v437
      %v439 = vadd.s32 %v437, 4294967288
      %v440 = vperm.slane %v435, %v439
      %vm441 = vcmask 130112
      %v442 = vsel %vm441, %v440, %v438
      %v444 = vmax.f32 %v386, %v442
      %vm445 = vcmask 122880
      %446 = vst.msk [vmem:[#allocation2] sm:$0x1] %vm445, %v444
      // Predicated region
      $region53: #{snet_forward.1} parent=47 // pred_check
        %p447 = pneg %p305
      $region54: #{snet_forward.1} parent=47 // pred_check_branch
        %449 = sbr.rel (%p447) target = $region56
      $region55: #{snet_forward.1} parent=47 // pred_region
        %v450 = vld [vmem:[#allocation2] sm:$0x1]
        %v451 = vld [vmem:[%s2] sm:$0x1]
        %v452 = vadd.f32 %v450, %v451
        %v453 = vmax.f32 %v452, 0.0
        %454 = vxpose.xlu0.b32.start [1/16] %v453, 128
        %455 = vxpose.xlu0.b32.cont [2/16] 0.0, 128
        %456 = vxpose.xlu0.b32.cont [3/16] 0.0, 128
        %457 = vxpose.xlu0.b32.cont [4/16] 0.0, 128
        %458 = vxpose.xlu0.b32.cont [5/16] 0.0, 128
        %459 = vxpose.xlu0.b32.cont [6/16] 0.0, 128
        %460 = vxpose.xlu0.b32.cont [7/16] 0.0, 128
        %461 = vxpose.xlu0.b32.cont [8/16] 0.0, 128
        %462 = vxpose.xlu0.b32.cont [9/16] 0.0, 128
        %463 = vxpose.xlu0.b32.cont [10/16] 0.0, 128
        %464 = vxpose.xlu0.b32.cont [11/16] 0.0, 128
        %465 = vxpose.xlu0.b32.cont [12/16] 0.0, 128
        %466 = vxpose.xlu0.b32.cont [13/16] 0.0, 128
        %467 = vxpose.xlu0.b32.cont [14/16] 0.0, 128
        %468 = vxpose.xlu0.b32.cont [15/16] 0.0, 128
        %469 = vxpose.xlu0.b32.end [16/16] 0.0, 128
        %v470 = vpop.trf.xlu0
        %v471 = vpop.trf.xlu0
        %v472 = vpop.trf.xlu0
        %v473 = vpop.trf.xlu0
        %v474 = vpop.trf.xlu0
        %v475 = vpop.trf.xlu0
        %v476 = vpop.trf.xlu0
        %v477 = vpop.trf.xlu0
        %v478 = vpop.trf.xlu0
        %v479 = vpop.trf.xlu0
        %v480 = vpop.trf.xlu0
        %v481 = vpop.trf.xlu0
        %v482 = vpop.trf.xlu0
        %v483 = vpop.trf.xlu0
        %v484 = vpop.trf.xlu0
        %v485 = vpop.trf.xlu0
        %v486 = vld [vmem:[%s3] sm:$0xff]
        %v487 = vld [vmem:[%s3 + $0x8] sm:$0xff]
        %v488 = vperm.slane %v486, 0
        %v489 = vlaneseq
        %v490 = vshrl.u32 %v489, 7
        %492 = vset.pattern.permute.xlu0 %v490
        %493 = vperm.xlu0 %492, %v488
        %v494 = vpop.permute.xlu0 %493
        %v495 = vlaneseq
        %v496 = vshrl.u32 %v495, 7
        %v497 = vadd.s32 %v496, 8
        %498 = vset.pattern.permute.xlu0 %v497
        %499 = vperm.xlu0 %498, %v488
        %v500 = vpop.permute.xlu0 %499
        %v501 = vperm.slane %v486, 1
        %v502 = vlaneseq
        %v503 = vshrl.u32 %v502, 7
        %505 = vset.pattern.permute.xlu0 %v503
        %506 = vperm.xlu0 %505, %v501
        %v507 = vpop.permute.xlu0 %506
        %v508 = vlaneseq
        %v509 = vshrl.u32 %v508, 7
        %v510 = vadd.s32 %v509, 8
        %511 = vset.pattern.permute.xlu0 %v510
        %512 = vperm.xlu0 %511, %v501
        %v513 = vpop.permute.xlu0 %512
        %v514 = vperm.slane %v486, 2
        %v515 = vlaneseq
        %v516 = vshrl.u32 %v515, 7
        %518 = vset.pattern.permute.xlu0 %v516
        %519 = vperm.xlu0 %518, %v514
        %v520 = vpop.permute.xlu0 %519
        %v521 = vlaneseq
        %v522 = vshrl.u32 %v521, 7
        %v523 = vadd.s32 %v522, 8
        %524 = vset.pattern.permute.xlu0 %v523
        %525 = vperm.xlu0 %524, %v514
        %v526 = vpop.permute.xlu0 %525
        %v527 = vperm.slane %v486, 3
        %v528 = vlaneseq
        %v529 = vshrl.u32 %v528, 7
        %531 = vset.pattern.permute.xlu0 %v529
        %532 = vperm.xlu0 %531, %v527
        %v533 = vpop.permute.xlu0 %532
        %v534 = vlaneseq
        %v535 = vshrl.u32 %v534, 7
        %v536 = vadd.s32 %v535, 8
        %537 = vset.pattern.permute.xlu0 %v536
        %538 = vperm.xlu0 %537, %v527
        %v539 = vpop.permute.xlu0 %538
        %v540 = vperm.slane %v486, 4
        %v541 = vlaneseq
        %v542 = vshrl.u32 %v541, 7
        %544 = vset.pattern.permute.xlu0 %v542
        %545 = vperm.xlu0 %544, %v540
        %v546 = vpop.permute.xlu0 %545
        %v547 = vlaneseq
        %v548 = vshrl.u32 %v547, 7
        %v549 = vadd.s32 %v548, 8
        %550 = vset.pattern.permute.xlu0 %v549
        %551 = vperm.xlu0 %550, %v540
        %v552 = vpop.permute.xlu0 %551
        %v553 = vperm.slane %v486, 5
        %v554 = vlaneseq
        %v555 = vshrl.u32 %v554, 7
        %557 = vset.pattern.permute.xlu0 %v555
        %558 = vperm.xlu0 %557, %v553
        %v559 = vpop.permute.xlu0 %558
        %v560 = vlaneseq
        %v561 = vshrl.u32 %v560, 7
        %v562 = vadd.s32 %v561, 8
        %563 = vset.pattern.permute.xlu0 %v562
        %564 = vperm.xlu0 %563, %v553
        %v565 = vpop.permute.xlu0 %564
        %v566 = vperm.slane %v486, 6
        %v567 = vlaneseq
        %v568 = vshrl.u32 %v567, 7
        %570 = vset.pattern.permute.xlu0 %v568
        %571 = vperm.xlu0 %570, %v566
        %v572 = vpop.permute.xlu0 %571
        %v573 = vlaneseq
        %v574 = vshrl.u32 %v573, 7
        %v575 = vadd.s32 %v574, 8
        %576 = vset.pattern.permute.xlu0 %v575
        %577 = vperm.xlu0 %576, %v566
        %v578 = vpop.permute.xlu0 %577
        %v579 = vperm.slane %v486, 7
        %v580 = vlaneseq
        %v581 = vshrl.u32 %v580, 7
        %583 = vset.pattern.permute.xlu0 %v581
        %584 = vperm.xlu0 %583, %v579
        %v585 = vpop.permute.xlu0 %584
        %v586 = vlaneseq
        %v587 = vshrl.u32 %v586, 7
        %v588 = vadd.s32 %v587, 8
        %589 = vset.pattern.permute.xlu0 %v588
        %590 = vperm.xlu0 %589, %v579
        %v591 = vpop.permute.xlu0 %590
        %v592 = vperm.slane %v487, 0
        %v593 = vlaneseq
        %v594 = vshrl.u32 %v593, 7
        %596 = vset.pattern.permute.xlu0 %v594
        %597 = vperm.xlu0 %596, %v592
        %v598 = vpop.permute.xlu0 %597
        %v599 = vlaneseq
        %v600 = vshrl.u32 %v599, 7
        %v601 = vadd.s32 %v600, 8
        %602 = vset.pattern.permute.xlu0 %v601
        %603 = vperm.xlu0 %602, %v592
        %v604 = vpop.permute.xlu0 %603
        %v605 = vperm.slane %v487, 1
        %v606 = vlaneseq
        %v607 = vshrl.u32 %v606, 7
        %609 = vset.pattern.permute.xlu0 %v607
        %610 = vperm.xlu0 %609, %v605
        %v611 = vpop.permute.xlu0 %610
        %v612 = vlaneseq
        %v613 = vshrl.u32 %v612, 7
        %v614 = vadd.s32 %v613, 8
        %615 = vset.pattern.permute.xlu0 %v614
        %616 = vperm.xlu0 %615, %v605
        %v617 = vpop.permute.xlu0 %616
        %v618 = vperm.slane %v487, 2
        %v619 = vlaneseq
        %v620 = vshrl.u32 %v619, 7
        %622 = vset.pattern.permute.xlu0 %v620
        %623 = vperm.xlu0 %622, %v618
        %v624 = vpop.permute.xlu0 %623
        %v625 = vlaneseq
        %v626 = vshrl.u32 %v625, 7
        %v627 = vadd.s32 %v626, 8
        %628 = vset.pattern.permute.xlu0 %v627
        %629 = vperm.xlu0 %628, %v618
        %v630 = vpop.permute.xlu0 %629
        %v631 = vperm.slane %v487, 3
        %v632 = vlaneseq
        %v633 = vshrl.u32 %v632, 7
        %635 = vset.pattern.permute.xlu0 %v633
        %636 = vperm.xlu0 %635, %v631
        %v637 = vpop.permute.xlu0 %636
        %v638 = vlaneseq
        %v639 = vshrl.u32 %v638, 7
        %v640 = vadd.s32 %v639, 8
        %641 = vset.pattern.permute.xlu0 %v640
        %642 = vperm.xlu0 %641, %v631
        %v643 = vpop.permute.xlu0 %642
        %v644 = vperm.slane %v487, 4
        %v645 = vlaneseq
        %v646 = vshrl.u32 %v645, 7
        %648 = vset.pattern.permute.xlu0 %v646
        %649 = vperm.xlu0 %648, %v644
        %v650 = vpop.permute.xlu0 %649
        %v651 = vlaneseq
        %v652 = vshrl.u32 %v651, 7
        %v653 = vadd.s32 %v652, 8
        %654 = vset.pattern.permute.xlu0 %v653
        %655 = vperm.xlu0 %654, %v644
        %v656 = vpop.permute.xlu0 %655
        %v657 = vperm.slane %v487, 5
        %v658 = vlaneseq
        %v659 = vshrl.u32 %v658, 7
        %661 = vset.pattern.permute.xlu0 %v659
        %662 = vperm.xlu0 %661, %v657
        %v663 = vpop.permute.xlu0 %662
        %v664 = vlaneseq
        %v665 = vshrl.u32 %v664, 7
        %v666 = vadd.s32 %v665, 8
        %667 = vset.pattern.permute.xlu0 %v666
        %668 = vperm.xlu0 %667, %v657
        %v669 = vpop.permute.xlu0 %668
        %v670 = vperm.slane %v487, 6
        %v671 = vlaneseq
        %v672 = vshrl.u32 %v671, 7
        %674 = vset.pattern.permute.xlu0 %v672
        %675 = vperm.xlu0 %674, %v670
        %v676 = vpop.permute.xlu0 %675
        %v677 = vlaneseq
        %v678 = vshrl.u32 %v677, 7
        %v679 = vadd.s32 %v678, 8
        %680 = vset.pattern.permute.xlu0 %v679
        %681 = vperm.xlu0 %680, %v670
        %v682 = vpop.permute.xlu0 %681
        %v683 = vperm.slane %v487, 7
        %v684 = vlaneseq
        %v685 = vshrl.u32 %v684, 7
        %687 = vset.pattern.permute.xlu0 %v685
        %688 = vperm.xlu0 %687, %v683
        %v689 = vpop.permute.xlu0 %688
        %v690 = vlaneseq
        %v691 = vshrl.u32 %v690, 7
        %v692 = vadd.s32 %v691, 8
        %693 = vset.pattern.permute.xlu0 %v692
        %694 = vperm.xlu0 %693, %v683
        %v695 = vpop.permute.xlu0 %694
        %v698 = vrot.slane %v470, 1
        %v699 = vrot.slane %v470, 2
        %v700 = vrot.slane %v470, 3
        %v701 = vrot.slane %v470, 4
        %v702 = vrot.slane %v470, 5
        %v703 = vrot.slane %v470, 6
        %v704 = vrot.slane %v470, 7
        %v705 = vrot.slane %v471, 1
        %v706 = vrot.slane %v471, 2
        %v707 = vrot.slane %v471, 3
        %v708 = vrot.slane %v471, 4
        %v709 = vrot.slane %v471, 5
        %v710 = vrot.slane %v471, 6
        %v711 = vrot.slane %v471, 7
        %v712 = vperm.slane %v470, 0
        %v713 = vperm.slane %v698, 0
        %v714 = vperm.slane %v699, 0
        %v715 = vperm.slane %v700, 0
        %v716 = vperm.slane %v701, 0
        %v717 = vperm.slane %v702, 0
        %v718 = vperm.slane %v703, 0
        %v719 = vperm.slane %v704, 0
        %v720 = vperm.slane %v471, 0
        %v721 = vperm.slane %v705, 0
        %v722 = vperm.slane %v706, 0
        %v723 = vperm.slane %v707, 0
        %v724 = vperm.slane %v708, 0
        %v725 = vperm.slane %v709, 0
        %v726 = vperm.slane %v710, 0
        %v727 = vperm.slane %v711, 0
        %v744 = vmul.f32 %v494, %v712
        %v745 = vmul.f32 %v500, %v712
        %v746 = vmul.f32 %v507, %v713
        %v747 = vmul.f32 %v513, %v713
        %v748 = vmul.f32 %v520, %v714
        %v749 = vmul.f32 %v526, %v714
        %v750 = vmul.f32 %v533, %v715
        %v751 = vmul.f32 %v539, %v715
        %v752 = vmul.f32 %v546, %v716
        %v753 = vmul.f32 %v552, %v716
        %v754 = vmul.f32 %v559, %v717
        %v755 = vmul.f32 %v565, %v717
        %v756 = vmul.f32 %v572, %v718
        %v757 = vmul.f32 %v578, %v718
        %v758 = vmul.f32 %v585, %v719
        %v759 = vmul.f32 %v591, %v719
        %v760 = vmul.f32 %v598, %v720
        %v761 = vmul.f32 %v604, %v720
        %v762 = vmul.f32 %v611, %v721
        %v763 = vmul.f32 %v617, %v721
        %v764 = vmul.f32 %v624, %v722
        %v765 = vmul.f32 %v630, %v722
        %v766 = vmul.f32 %v637, %v723
        %v767 = vmul.f32 %v643, %v723
        %v768 = vmul.f32 %v650, %v724
        %v769 = vmul.f32 %v656, %v724
        %v770 = vmul.f32 %v663, %v725
        %v771 = vmul.f32 %v669, %v725
        %v772 = vmul.f32 %v676, %v726
        %v773 = vmul.f32 %v682, %v726
        %v774 = vmul.f32 %v689, %v727
        %v775 = vmul.f32 %v695, %v727
        %vm776 = vcmask 7168
        %v777 = vsel %vm776, %v744, 0.0
        %v778 = vsel %vm776, %v746, 0.0
        %v779 = vadd.f32 %v777, %v778
        %v780 = vsel %vm776, %v748, 0.0
        %v781 = vadd.f32 %v779, %v780
        %v782 = vsel %vm776, %v750, 0.0
        %v783 = vadd.f32 %v781, %v782
        %v784 = vsel %vm776, %v752, 0.0
        %v785 = vadd.f32 %v783, %v784
        %v786 = vsel %vm776, %v754, 0.0
        %v787 = vadd.f32 %v785, %v786
        %v788 = vsel %vm776, %v756, 0.0
        %v789 = vadd.f32 %v787, %v788
        %v790 = vsel %vm776, %v758, 0.0
        %v791 = vadd.f32 %v789, %v790
        %v792 = vsel %vm776, %v760, 0.0
        %v793 = vadd.f32 %v791, %v792
        %v794 = vsel %vm776, %v762, 0.0
        %v795 = vadd.f32 %v793, %v794
        %v796 = vsel %vm776, %v764, 0.0
        %v797 = vadd.f32 %v795, %v796
        %v798 = vsel %vm776, %v766, 0.0
        %v799 = vadd.f32 %v797, %v798
        %v800 = vsel %vm776, %v768, 0.0
        %v801 = vadd.f32 %v799, %v800
        %v802 = vsel %vm776, %v770, 0.0
        %v803 = vadd.f32 %v801, %v802
        %v804 = vsel %vm776, %v772, 0.0
        %v805 = vadd.f32 %v803, %v804
        %v806 = vsel %vm776, %v774, 0.0
        %v807 = vadd.f32 %v805, %v806
        %vm808 = vcmask 0
        %v809 = vsel %vm808, %v745, 0.0
        %v810 = vsel %vm808, %v747, 0.0
        %v811 = vadd.f32 %v809, %v810
        %v812 = vsel %vm808, %v749, 0.0
        %v813 = vadd.f32 %v811, %v812
        %v814 = vsel %vm808, %v751, 0.0
        %v815 = vadd.f32 %v813, %v814
        %v816 = vsel %vm808, %v753, 0.0
        %v817 = vadd.f32 %v815, %v816
        %v818 = vsel %vm808, %v755, 0.0
        %v819 = vadd.f32 %v817, %v818
        %v820 = vsel %vm808, %v757, 0.0
        %v821 = vadd.f32 %v819, %v820
        %v822 = vsel %vm808, %v759, 0.0
        %v823 = vadd.f32 %v821, %v822
        %v824 = vsel %vm808, %v761, 0.0
        %v825 = vadd.f32 %v823, %v824
        %v826 = vsel %vm808, %v763, 0.0
        %v827 = vadd.f32 %v825, %v826
        %v828 = vsel %vm808, %v765, 0.0
        %v829 = vadd.f32 %v827, %v828
        %v830 = vsel %vm808, %v767, 0.0
        %v831 = vadd.f32 %v829, %v830
        %v832 = vsel %vm808, %v769, 0.0
        %v833 = vadd.f32 %v831, %v832
        %v834 = vsel %vm808, %v771, 0.0
        %v835 = vadd.f32 %v833, %v834
        %v836 = vsel %vm808, %v773, 0.0
        %v837 = vadd.f32 %v835, %v836
        %v838 = vsel %vm808, %v775, 0.0
        %v839 = vadd.f32 %v837, %v838
        %v840 = vld [vmem:[%s4] sm:$0xff]
        %v841 = vld [vmem:[%s4 + $0x8] sm:$0x1]
        %v842 = vadd.f32 %v807, %v840
        %v843 = vadd.f32 %v839, %v841
        %v844 = vmax.f32 %v842, 0.0
        %v845 = vmax.f32 %v843, 0.0
        %v846 = vld [vmem:[%s5] sm:$0xff]
        %v847 = vld [vmem:[%s5 + $0x8] sm:$0x1]
        %v848 = vmul.f32 %v846, %v844
        %v849 = vmul.f32 %v847, %v845
        %v850 = vsel %vm776, %v848, 0.0
        %v851 = vsel %vm808, %v849, 0.0
        %v852 = vadd.f32 %v850, %v851
        %v853 = vrot.slane %v852, 4
        %v854 = vadd.f32 %v852, %v853
        %v855 = vrot.slane %v854, 2
        %v856 = vadd.f32 %v854, %v855
        %v857 = vrot.slane %v856, 1
        %v858 = vadd.f32 %v856, %v857
        %v859 = vld [vmem:[#allocation3] sm:$0x1]
        %v860 = vadd.f32 %v858, %v859
        %861 = vst.msk [vmem:[%s304] sm:$0x1] %vm808, %v860
      $region56: #{snet_forward.1} parent=47 // pred_fallthru
        _
      %p862 = scmp.lt.s32.totalorder %s24, 1
      %s863 = scalar_select %p862, %s24, 1
      %s864 = scalar_lea.vmem %s7, %s863
      // Predicated region
      $region57: #{snet_forward.1} parent=47 // pred_check
        %p865 = pneg %p204
      $region58: #{snet_forward.1} parent=47 // pred_check_branch
        %867 = sbr.rel (%p865) target = $region60
      $region59: #{snet_forward.1} parent=47 // pred_region
        _
      $region60: #{snet_forward.1} parent=47 // pred_fallthru
        _
    $region48: #{snet_forward.1} parent=5 // pred_fallthru
      _
    %p868 = scmp.le.s32.totalorder 2, %s15
    // Predicated region
    $region61: #{snet_forward.1} parent=5 // pred_check
      %p869 = pneg %p868
    $region62: #{snet_forward.1} parent=5 // pred_check_branch
      %871 = sbr.rel (%p869) target = $region64
    $region63: #{snet_forward.1} parent=5 // pred_region
      %s872 = ssub.s32 %s15, 2
      // Predicated region
      $region65: #{snet_forward.1} parent=63 // pred_check
        %p873 = pneg %p210
      $region66: #{snet_forward.1} parent=63 // pred_check_branch
        %875 = sbr.rel (%p873) target = $region68
      $region67: #{snet_forward.1} parent=63 // pred_region
        %p876 = scmp.lt.s32.totalorder %s26, 1
        %s877 = scalar_select %p876, %s26, 1
        %s878 = scalar_lea.vmem %s7, %s877
      $region68: #{snet_forward.1} parent=63 // pred_fallthru
        _
    $region64: #{snet_forward.1} parent=5 // pred_fallthru
      _
  $region6: #{snet_forward.1} parent=0 // loop_footer
    %s19 = sadd.s32 1, %s15
  $region7: #{snet_forward.1} parent=0 // loop_footer_branch
    %14 = sbr.rel target = $region3
  $region8: #{snet_forward.1} parent=0 // loop_exit
    _

</llo_original>
